<compile_context>
chip_gen: v7x
topology: tpu7x:2x2x1
jax: 0.10.0
libtpu: 0.0.40
codegen_flags: <defaults>
</compile_context>

<pallas_src>
import functools
import math

import jax
import jax.numpy as jnp
import numpy as np
from jax.experimental import pallas as pl
from jax.experimental.pallas import tpu as pltpu


def _cdiv(a, b):
    return -(-a // b)


def _round_up(n, m):
    return _cdiv(n, m) * m


def _rmsnorm_kernel(*refs, d_x, has_seg, has_mask, has_offset, eps):
    # ref order: x, scale, [seg | mask], [offset], out
    it = iter(refs)
    x_ref = next(it)
    scale_ref = next(it)
    seg_ref = next(it) if has_seg else None
    mask_ref = next(it) if has_mask else None
    offset_ref = next(it) if has_offset else None
    o_ref = next(it)

    x = x_ref[...].astype(jnp.float32)          # (tm, W)
    xsq = x * x

    if has_seg:
        # Segmented (per original row) sum of squares on the otherwise-idle MXU.
        # seg is 0/1 (exactly representable in bf16; partial-mode mask already folded in).
        # A 2-pass hi/lo bf16 split of xsq keeps ~f32 accuracy at a third of the MXU work
        # of a Precision.HIGHEST f32 matmul.  Result is broadcast across each segment.
        seg = seg_ref[...]                      # (W, W) bf16, VMEM-resident
        hi = xsq.astype(jnp.bfloat16)
        lo = (xsq - hi.astype(jnp.float32)).astype(jnp.bfloat16)
        sumsq = (jnp.dot(hi, seg, preferred_element_type=jnp.float32)
                 + jnp.dot(lo, seg, preferred_element_type=jnp.float32))   # (tm, W)
    else:
        if has_mask:
            xsq = xsq * mask_ref[...]           # partial RMSNorm: one vmul, no per-step iota
        sumsq = jnp.sum(xsq, axis=-1, keepdims=True)                        # (tm, 1)

    rms = jnp.sqrt(sumsq * (1.0 / float(d_x)))
    # eps is added to rms (not sumsq), exactly as the PyTorch reference does.
    inv = pl.reciprocal(rms + eps, approx=False)   # exact; keeps rtol=1e-5 vs reference
    out = x * inv * scale_ref[...].astype(jnp.float32)
    if has_offset:
        out = out + offset_ref[...].astype(jnp.float32)
    o_ref[...] = out.astype(o_ref.dtype)


def rmsnorm(x, scale, *, p=-1.0, eps=1e-8, offset=None, row_tile=4096):
    """RMSNorm over the last axis of x. x: (..., d), scale: (d,), optional offset: (d,)."""
    orig_shape = x.shape
    d = int(orig_shape[-1])
    rows = int(np.prod(orig_shape[:-1])) if len(orig_shape) > 1 else 1

    if p < 0.0 or p > 1.0:
        partial_size = None
        d_x = d
    else:
        partial_size = int(d * p)
        if partial_size <= 0:
            raise ValueError("partial RMSNorm with int(d * p) == 0 divides by zero")
        d_x = partial_size

    # Lane-dense packing: for small d, pack G = lcm(d,128)//d original rows per packed row of
    # W = lcm(d,128) lanes so output stores are full-lane (no masked vst.msk partial stores).
    G, W = 1, d
    if d < 128:
        lcm = d * 128 // math.gcd(d, 128)
        if lcm <= 512:
            G, W = lcm // d, lcm

    itemsize = int(np.dtype(x.dtype).itemsize)
    sub = max(8, 32 // max(1, itemsize))     # native sublane pack: f32->8, bf16->16, int8->32

    # Pad rows only to the packing / sublane granularity (G*sub), NOT to a multiple of the
    # row tile: the ragged last grid block is handled by Pallas' masked out-of-bounds stores
    # (rows are independent, so garbage tail rows never contaminate kept outputs).
    pad_to = G * sub
    rows_pad = _round_up(rows, pad_to)
    x2 = x.reshape(rows, d)
    if rows_pad != rows:
        # Zero rows are harmless: sumsq=0 -> rms=0 -> out = 0 * (1/eps) * scale = 0 (no NaNs).
        x2 = jnp.pad(x2, ((0, rows_pad - rows), (0, 0)))
    packed_rows = rows_pad // G
    x2 = x2.reshape(packed_rows, W)

    # Row tile: large blocks (>= 1-2 MiB) amortize the ~0.35 us per-grid-step overhead on a
    # purely HBM-bound op.  Cap the f32-equivalent block at ~4 MiB so 2 in + 2 out pipeline
    # buffers plus f32 temporaries stay well inside the 48 MiB VMEM budget (v7x: 64 MiB/TC).
    max_tile_rows = max(sub, (((4 << 20) // (W * 4)) // sub) * sub)
    tm = max(sub, (min(int(row_tile), max_tile_rows) // sub) * sub)
    # Keep >= 4 grid steps (2 TCs x double buffering on v7x) when blocks can stay >= ~1 MiB.
    min_tm_1mb = max(sub, _round_up(_cdiv(1 << 20, W * itemsize), sub))
    if packed_rows >= 4 * min_tm_1mb:
        tm = min(tm, _round_up(_cdiv(packed_rows, 4), sub))
    tm = min(tm, packed_rows)
    grid_steps = _cdiv(packed_rows, tm)

    def _bcast(v):
        v2 = v.reshape(1, d)
        if G > 1:
            v2 = jnp.tile(v2, (1, G))        # (1, W)
        return v2

    has_seg = G > 1
    has_mask = (G == 1) and (partial_size is not None) and (partial_size < d)
    has_offset = offset is not None

    operands = [x2, _bcast(scale)]
    in_specs = [
        pl.BlockSpec((tm, W), lambda i: (i, 0)),   # x row-tile (lane-dense)
        pl.BlockSpec((1, W), lambda i: (0, 0)),    # scale (broadcast, VMEM-resident)
    ]
    if has_seg:
        # Hoisted 0/1 block-diagonal segment matrix (partial-mode mask folded in); built once
        # on the host, DMA'd once (constant index_map), exactly representable in bf16.
        idx = np.arange(W)
        seg_np = (idx[:, None] // d) == (idx[None, :] // d)
        if partial_size is not None and partial_size < d:
            seg_np = seg_np & ((idx[:, None] % d) < partial_size)
        operands.append(jnp.asarray(seg_np.astype(np.float32), dtype=jnp.bfloat16))
        in_specs.append(pl.BlockSpec((W, W), lambda i: (0, 0)))
    if has_mask:
        mask_np = (np.arange(d) < partial_size).astype(np.float32).reshape(1, d)
        operands.append(jnp.asarray(mask_np))
        in_specs.append(pl.BlockSpec((1, W), lambda i: (0, 0)))
    if has_offset:
        operands.append(_bcast(offset))
        in_specs.append(pl.BlockSpec((1, W), lambda i: (0, 0)))

    kernel = functools.partial(
        _rmsnorm_kernel, d_x=d_x, has_seg=has_seg, has_mask=has_mask,
        has_offset=has_offset, eps=float(eps))

    out = pl.pallas_call(
        kernel,
        out_shape=jax.ShapeDtypeStruct((packed_rows, W), x.dtype),
        grid_spec=pltpu.PrefetchScalarGridSpec(
            num_scalar_prefetch=0,
            grid=(grid_steps,),
            in_specs=in_specs,
            out_specs=pl.BlockSpec((tm, W), lambda i: (i, 0)),
        ),
        compiler_params=pltpu.CompilerParams(
            dimension_semantics=("parallel",),         # shards row blocks across v7x's 2 TCs
            vmem_limit_bytes=48 * 1024 * 1024,         # > 32 MiB scoped default, < v7x 64 MiB
        ),
    )(*operands)

    out = out.reshape(rows_pad, d)
    if rows_pad != rows:
        out = out[:rows]
    return out.reshape(orig_shape)


def rmsnorm_ref(x, scale, *, p=-1.0, eps=1e-8, offset=None):
    """Pure-JAX reference mirroring the PyTorch forward exactly."""
    d = x.shape[-1]
    if p < 0.0 or p > 1.0:
        norm_x = jnp.linalg.norm(x, ord=2, axis=-1, keepdims=True)
        d_x = d
    else:
        partial_size = int(d * p)
        norm_x = jnp.linalg.norm(x[..., :partial_size], ord=2, axis=-1, keepdims=True)
        d_x = partial_size
    rms_x = norm_x * (d_x ** (-0.5))
    out = scale * (x / (rms_x + eps))
    if offset is not None:
        out = out + offset
    return out


if __name__ == "__main__":
    key = jax.random.PRNGKey(0)

    # Case 1: module default — RMSNorm(d=32), p=-1.0 (full norm), eps=1e-8, bias=False.
    x = jax.random.normal(key, (2, 8, 32), dtype=jnp.float32)
    scale = jnp.ones((32,), dtype=jnp.float32)          # matches nn.Parameter(torch.ones(d))
    out = jax.block_until_ready(rmsnorm(x, scale, p=-1.0, eps=1e-8))
    ref = rmsnorm_ref(x, scale, p=-1.0, eps=1e-8)
    np.testing.assert_allclose(np.asarray(out), np.asarray(ref), rtol=1e-5, atol=1e-5)

    # Case 2: partial RMSNorm (p=0.5), ragged row count (padding + packing + folded mask).
    x2 = jax.random.normal(jax.random.PRNGKey(1), (3, 5, 32), dtype=jnp.float32)
    s2 = jax.random.normal(jax.random.PRNGKey(2), (32,), dtype=jnp.float32)
    out2 = jax.block_until_ready(rmsnorm(x2, s2, p=0.5, eps=1e-8))
    ref2 = rmsnorm_ref(x2, s2, p=0.5, eps=1e-8)
    np.testing.assert_allclose(np.asarray(out2), np.asarray(ref2), rtol=1e-5, atol=1e-5)

    # Case 3: already lane-dense feature dim (G == 1 path).
    x3 = jax.random.normal(jax.random.PRNGKey(3), (2, 4, 128), dtype=jnp.float32)
    s3 = jnp.ones((128,), dtype=jnp.float32)
    out3 = jax.block_until_ready(rmsnorm(x3, s3))
    ref3 = rmsnorm_ref(x3, s3)
    np.testing.assert_allclose(np.asarray(out3), np.asarray(ref3), rtol=1e-5, atol=1e-5)

    # Case 4: packed path with a multi-step grid and a ragged last block (masked stores).
    x4 = jax.random.normal(jax.random.PRNGKey(4), (7, 40, 32), dtype=jnp.float32)
    s4 = jax.random.normal(jax.random.PRNGKey(5), (32,), dtype=jnp.float32)
    out4 = jax.block_until_ready(rmsnorm(x4, s4, row_tile=64))
    ref4 = rmsnorm_ref(x4, s4)
    np.testing.assert_allclose(np.asarray(out4), np.asarray(ref4), rtol=1e-5, atol=1e-5)

    # Case 5: G == 1 path with a ragged last grid block (no wrapper-side padding at all).
    x5 = jax.random.normal(jax.random.PRNGKey(6), (5, 8, 256), dtype=jnp.float32)
    s5 = jax.random.normal(jax.random.PRNGKey(7), (256,), dtype=jnp.float32)
    out5 = jax.block_until_ready(rmsnorm(x5, s5, row_tile=16))
    ref5 = rmsnorm_ref(x5, s5)
    np.testing.assert_allclose(np.asarray(out5), np.asarray(ref5), rtol=1e-5, atol=1e-5)

    # Case 6: bias=True branch (scale * x_normed + offset), d=64 packed path.
    x6 = jax.random.normal(jax.random.PRNGKey(8), (2, 6, 64), dtype=jnp.float32)
    s6 = jax.random.normal(jax.random.PRNGKey(9), (64,), dtype=jnp.float32)
    b6 = jax.random.normal(jax.random.PRNGKey(10), (64,), dtype=jnp.float32)
    out6 = jax.block_until_ready(rmsnorm(x6, s6, offset=b6))
    ref6 = rmsnorm_ref(x6, s6, offset=b6)
    np.testing.assert_allclose(np.asarray(out6), np.asarray(ref6), rtol=1e-5, atol=1e-5)

    print("KERNEL_OK")
</pallas_src>

<mosaic_0001>
module attributes {stable_mosaic.version = 11 : i64} {
  func.func @_rmsnorm_kernel(%arg0: i32, %arg1: memref<8x128xf32, #tpu.memory_space<vmem>>, %arg2: memref<1x128xf32, #tpu.memory_space<vmem>>, %arg3: memref<128x128xbf16, #tpu.memory_space<vmem>>, %arg4: memref<8x128xf32, #tpu.memory_space<vmem>>) attributes {dimension_semantics = [#tpu.dimension_semantics<parallel>], iteration_bounds = array<i64: 1>, scalar_prefetch = 0 : i64, scratch_operands = 0 : i64, tpu.core_type = #tpu.core_type<tc>, window_params = [{transform_indices = @transform_0, window_bounds = array<i64: 8, 128>}, {pipeline_mode = #tpu.pipeline_mode<synchronous>, transform_indices = @transform_1, window_bounds = array<i64: 1, 128>}, {pipeline_mode = #tpu.pipeline_mode<synchronous>, transform_indices = @transform_2, window_bounds = array<i64: 128, 128>}, {transform_indices = @transform_3, window_bounds = array<i64: 8, 128>}]} {
    %c0 = arith.constant 0 : index
    %c0_0 = arith.constant 0 : index
    %0 = vector.load %arg1[%c0, %c0_0] : memref<8x128xf32, #tpu.memory_space<vmem>>, vector<8x128xf32>
    %1 = arith.mulf %0, %0 : vector<8x128xf32>
    %c0_1 = arith.constant 0 : index
    %c0_2 = arith.constant 0 : index
    %2 = vector.load %arg3[%c0_1, %c0_2] : memref<128x128xbf16, #tpu.memory_space<vmem>>, vector<128x128xbf16>
    %3 = arith.truncf %1 : vector<8x128xf32> to vector<8x128xbf16>
    %4 = arith.extf %3 : vector<8x128xbf16> to vector<8x128xf32>
    %5 = arith.subf %1, %4 : vector<8x128xf32>
    %6 = arith.truncf %5 : vector<8x128xf32> to vector<8x128xbf16>
    %cst = arith.constant dense<0.000000e+00> : vector<8x128xf32>
    %7 = tpu.matmul %3, %2, %cst {dimension_numbers = #tpu.dot_dimension_numbers<[1], [0], [0], [1], [0, 0, 1, 1], [], []>} : vector<8x128xbf16>, vector<128x128xbf16>, vector<8x128xf32> -> vector<8x128xf32>
    %cst_3 = arith.constant dense<0.000000e+00> : vector<8x128xf32>
    %8 = tpu.matmul %6, %2, %cst_3 {dimension_numbers = #tpu.dot_dimension_numbers<[1], [0], [0], [1], [0, 0, 1, 1], [], []>} : vector<8x128xbf16>, vector<128x128xbf16>, vector<8x128xf32> -> vector<8x128xf32>
    %9 = arith.addf %7, %8 : vector<8x128xf32>
    %cst_4 = arith.constant 3.125000e-02 : f32
    %10 = vector.broadcast %cst_4 : f32 to vector<8x128xf32>
    %11 = arith.mulf %9, %10 : vector<8x128xf32>
    %12 = math.sqrt %11 : vector<8x128xf32>
    %cst_5 = arith.constant 9.99999993E-9 : f32
    %13 = vector.broadcast %cst_5 : f32 to vector<8x128xf32>
    %14 = arith.addf %12, %13 : vector<8x128xf32>
    %15 = tpu.reciprocal %14 : vector<8x128xf32> -> vector<8x128xf32>
    %16 = arith.mulf %0, %15 : vector<8x128xf32>
    %c0_6 = arith.constant 0 : index
    %c0_7 = arith.constant 0 : index
    %17 = vector.load %arg2[%c0_6, %c0_7] : memref<1x128xf32, #tpu.memory_space<vmem>>, vector<1x128xf32>
    %18 = vector.broadcast %17 : vector<1x128xf32> to vector<8x128xf32>
    %19 = arith.mulf %16, %18 : vector<8x128xf32>
    %c0_8 = arith.constant 0 : index
    %c0_9 = arith.constant 0 : index
    %20 = vector.load %arg4[%c0_8, %c0_9] : memref<8x128xf32, #tpu.memory_space<vmem>>, vector<8x128xf32>
    tpu.vector_store %arg4[%c0_8, %c0_9], %19 {strides = array<i32>} : memref<8x128xf32, #tpu.memory_space<vmem>>, vector<8x128xf32>,
    return
  }
  func.func @transform_0(%arg0: i32) -> (i32, i32) {
    %c0_i32 = arith.constant 0 : i32
    %c0_i32_0 = arith.constant 0 : i32
    return %arg0, %c0_i32 : i32, i32
  }
  func.func @transform_1(%arg0: i32) -> (i32, i32) {
    %c0_i32 = arith.constant 0 : i32
    %c0_i32_0 = arith.constant 0 : i32
    %c0_i32_1 = arith.constant 0 : i32
    return %c0_i32, %c0_i32_0 : i32, i32
  }
  func.func @transform_2(%arg0: i32) -> (i32, i32) {
    %c0_i32 = arith.constant 0 : i32
    %c0_i32_0 = arith.constant 0 : i32
    %c0_i32_1 = arith.constant 0 : i32
    return %c0_i32, %c0_i32_0 : i32, i32
  }
  func.func @transform_3(%arg0: i32) -> (i32, i32) {
    %c0_i32 = arith.constant 0 : i32
    %c0_i32_0 = arith.constant 0 : i32
    return %arg0, %c0_i32 : i32, i32
  }
}

</mosaic_0001>

<llo_original>
// kernel: tpu_custom_call.1
$region0: #{tpu_custom_call.1}
  #allocation0 [shape = 'u32[]', space=smem, size = 0x4, offset = 0x4, fixed_abs, tag = 'smem constant byte address 0x4 - core index']
  #allocation1 [shape = 'u32[144,128]{1,0:T(1,128)}', space=vmem, size = 0x12000, scoped, tag = 'internal scratch']
  %s0 = inlined_call_operand.hbm [shape: f32[8,128], index: 0, kind: input, shape index: {}]
  %s1 = inlined_call_operand.vmem [shape: f32[1,128], index: 1, kind: input, shape index: {}]
  %s2 = inlined_call_operand.hbm [shape: bf16[128,128], index: 2, kind: input, shape index: {}]
  %s3 = inlined_call_operand.hbm [shape: f32[8,128], index: 3, kind: output, shape index: {}]
  %s4 = sld [smem:[#allocation0]]
  $region30: #{tpu_custom_call.1} parent=0
    _
  %s6 = ssub.s32 1, %s4
  %s7 = scalar_select 0, %s6, %s4
  $region1: #{tpu_custom_call.1} parent=0
    #allocation2 [shape = 'u8[4096]{0}', space=vmem, size = 0x1000, scoped, tag = 'input window, operand 0, single buffered']
    #allocation3 [shape = 's32[1]{0}', space=sflag, size = 0x4, scoped, tag = 'scoped memory for tpu_custom_call.1']
    #allocation4 [shape = 's32[1]{0}', space=sflag, size = 0x4, scoped, tag = 'scoped memory for tpu_custom_call.1']
    #allocation5 [shape = 'u8[32768]{0}', space=vmem, size = 0x8000, scoped, tag = 'input window, operand 2, single buffered']
    #allocation6 [shape = 's32[1]{0}', space=sflag, size = 0x4, scoped, tag = 'scoped memory for tpu_custom_call.1']
    #allocation7 [shape = 'u8[4096]{0}', space=vmem, size = 0x1000, scoped, tag = 'output window, operand 0, single buffered']
    %8 = vsyncpa [#allocation3], 0
    %9 = vsyncpa [#allocation6], 0
    %10 = vsyncpa [#allocation4], 0
    // Predicated region
    $region2: #{tpu_custom_call.1} parent=1 // pred_check
      _
    $region3: #{tpu_custom_call.1} parent=1 // pred_check_branch
      %12 = sbr.rel (0) target = $region5
    $region4: #{tpu_custom_call.1} parent=1 // pred_region
      %s14 = ssub.s32 128, 128
      %15 = vsyncadd [#allocation3], %s14
      %s17 = sshll.u32 [#allocation2], 4
      %s18 = int_to_ptr.vmem [resolvable:$true] %s17
      %20 = dma.hbm_to_vmem [thread:$0]  %s0, 128, %s18, [#allocation3]
    $region5: #{tpu_custom_call.1} parent=1 // pred_fallthru
      _
    // Predicated region
    $region6: #{tpu_custom_call.1} parent=1 // pred_check
      _
    $region7: #{tpu_custom_call.1} parent=1 // pred_check_branch
      %22 = sbr.rel (0) target = $region9
    $region8: #{tpu_custom_call.1} parent=1 // pred_region
      _
    $region9: #{tpu_custom_call.1} parent=1 // pred_fallthru
      _
    // Predicated region
    $region10: #{tpu_custom_call.1} parent=1 // pred_check
      _
    $region11: #{tpu_custom_call.1} parent=1 // pred_check_branch
      %24 = sbr.rel (0) target = $region13
    $region12: #{tpu_custom_call.1} parent=1 // pred_region
      %s26 = ssub.s32 1024, 1024
      %27 = vsyncadd [#allocation6], %s26
      %s28 = sshll.u32 [#allocation5], 4
      %s29 = int_to_ptr.vmem [resolvable:$true] %s28
      %34 = dma.hbm_to_vmem [thread:$0]  %s2, 1024, %s29, [#allocation6], 64, 64, 4
    $region13: #{tpu_custom_call.1} parent=1 // pred_fallthru
      _
    // Predicated region
    $region14: #{tpu_custom_call.1} parent=1 // pred_check
      _
    $region15: #{tpu_custom_call.1} parent=1 // pred_check_branch
      %36 = sbr.rel (0) target = $region17
    $region16: #{tpu_custom_call.1} parent=1 // pred_region
      %37 = dma.done [#allocation3], 128
    $region17: #{tpu_custom_call.1} parent=1 // pred_fallthru
      _
    // Predicated region
    $region18: #{tpu_custom_call.1} parent=1 // pred_check
      _
    $region19: #{tpu_custom_call.1} parent=1 // pred_check_branch
      %39 = sbr.rel (0) target = $region21
    $region20: #{tpu_custom_call.1} parent=1 // pred_region
      %40 = dma.done [#allocation6], 1024
    $region21: #{tpu_custom_call.1} parent=1 // pred_fallthru
      _
    %v42 = vld [vmem:[#allocation2] sm:$0xff]
    %v43 = vmul.f32 %v42, %v42
    %v44 = vld [vmem:[#allocation5] sm:$0xf]
    %v45 = vld [vmem:[#allocation5 + $0x4] sm:$0xf]
    %v46 = vld [vmem:[#allocation5 + $0x8] sm:$0xf]
    %v47 = vld [vmem:[#allocation5 + $0xc] sm:$0xf]
    %v48 = vld [vmem:[#allocation5 + $0x10] sm:$0xf]
    %v49 = vld [vmem:[#allocation5 + $0x14] sm:$0xf]
    %v50 = vld [vmem:[#allocation5 + $0x18] sm:$0xf]
    %v51 = vld [vmem:[#allocation5 + $0x1c] sm:$0xf]
    %v52 = vld [vmem:[#allocation5 + $0x20] sm:$0xf]
    %v53 = vld [vmem:[#allocation5 + $0x24] sm:$0xf]
    %v54 = vld [vmem:[#allocation5 + $0x28] sm:$0xf]
    %v55 = vld [vmem:[#allocation5 + $0x2c] sm:$0xf]
    %v56 = vld [vmem:[#allocation5 + $0x30] sm:$0xf]
    %v57 = vld [vmem:[#allocation5 + $0x34] sm:$0xf]
    %v58 = vld [vmem:[#allocation5 + $0x38] sm:$0xf]
    %v59 = vld [vmem:[#allocation5 + $0x3c] sm:$0xf]
    %v60 = vpack.c.bf16 %v43, %v43
    %v61 = vunpack.c.l.bf16 %v60
    %v62 = vsub.f32 %v43, %v61
    %v63 = vpack.c.bf16 %v62, %v62
    %v80 = vunpack.c.l.b16 %v44
    %v81 = vunpack.c.l.b16 %v45
    %v82 = vunpack.c.l.b16 %v46
    %v83 = vunpack.c.l.b16 %v47
    %v84 = vunpack.c.l.b16 %v48
    %v85 = vunpack.c.l.b16 %v49
    %v86 = vunpack.c.l.b16 %v50
    %v87 = vunpack.c.l.b16 %v51
    %v88 = vunpack.c.l.b16 %v52
    %v89 = vunpack.c.l.b16 %v53
    %v90 = vunpack.c.l.b16 %v54
    %v91 = vunpack.c.l.b16 %v55
    %v92 = vunpack.c.l.b16 %v56
    %v93 = vunpack.c.l.b16 %v57
    %v94 = vunpack.c.l.b16 %v58
    %v95 = vunpack.c.l.b16 %v59
    %v96 = vpack.c.b16 %v81, %v80
    %v97 = vpack.c.b16 %v83, %v82
    %v98 = vpack.c.b16 %v85, %v84
    %v99 = vpack.c.b16 %v87, %v86
    %v100 = vpack.c.b16 %v89, %v88
    %v101 = vpack.c.b16 %v91, %v90
    %v102 = vpack.c.b16 %v93, %v92
    %v103 = vpack.c.b16 %v95, %v94
    %112 = vmatprep.subr.bf16.mxu0 0
    %113 = vmatpush1.bf16.msra.mxu0 %v96
    %114 = vmatprep.subr.bf16.mxu0 0
    %115 = vmatpush1.bf16.msra.mxu0 %v97
    %116 = vmatprep.subr.bf16.mxu0 0
    %117 = vmatpush1.bf16.msra.mxu0 %v98
    %118 = vmatprep.subr.bf16.mxu0 0
    %119 = vmatpush1.bf16.msra.mxu0 %v99
    %120 = vmatprep.subr.bf16.mxu0 0
    %121 = vmatpush1.bf16.msra.mxu0 %v100
    %122 = vmatprep.subr.bf16.mxu0 0
    %123 = vmatpush1.bf16.msra.mxu0 %v101
    %124 = vmatprep.subr.bf16.mxu0 0
    %125 = vmatpush1.bf16.msra.mxu0 %v102
    %126 = vmatprep.subr.bf16.mxu0 0
    %127 = vmatpush1.bf16.msra.mxu0 %v103
    %128 = vmatprep.subr.bf16.mxu0 0
    %129 = vmatpush1.bf16.msra.mxu0 0
    %130 = vmatprep.subr.bf16.mxu0 0
    %131 = vmatpush1.bf16.msra.mxu0 0
    %132 = vmatprep.subr.bf16.mxu0 0
    %133 = vmatpush1.bf16.msra.mxu0 0
    %134 = vmatprep.subr.bf16.mxu0 0
    %135 = vmatpush1.bf16.msra.mxu0 0
    %136 = vmatprep.subr.bf16.mxu0 0
    %137 = vmatpush1.bf16.msra.mxu0 0
    %138 = vmatprep.subr.bf16.mxu0 0
    %139 = vmatpush1.bf16.msra.mxu0 0
    %140 = vmatprep.subr.bf16.mxu0 0
    %141 = vmatpush1.bf16.msra.mxu0 0
    %142 = vmatprep.subr.bf16.mxu0 0
    %143 = vmatpush1.bf16.msra.mxu0 0
    %144 = vmatprep.mubr.bf16.mxu0 0
    %145 = vmatmul.mubr.bf16.gmra.mrb[0].mxu0 %v63
    %v146 = vpop.f32.mrb[0].mxu0
    %v147 = vadd.f32 0.0, %v146
    %v148 = vpop.f32.mrb[0].mxu0
    %v149 = vpop.f32.mrb[0].mxu0
    %v150 = vpop.f32.mrb[0].mxu0
    %151 = vdwg.mxu0
    %152 = vmatprep.subr.bf16.mxu0 0
    %153 = vmatpush1.bf16.msra.mxu0 %v96
    %154 = vmatprep.subr.bf16.mxu0 0
    %155 = vmatpush1.bf16.msra.mxu0 %v97
    %156 = vmatprep.subr.bf16.mxu0 0
    %157 = vmatpush1.bf16.msra.mxu0 %v98
    %158 = vmatprep.subr.bf16.mxu0 0
    %159 = vmatpush1.bf16.msra.mxu0 %v99
    %160 = vmatprep.subr.bf16.mxu0 0
    %161 = vmatpush1.bf16.msra.mxu0 %v100
    %162 = vmatprep.subr.bf16.mxu0 0
    %163 = vmatpush1.bf16.msra.mxu0 %v101
    %164 = vmatprep.subr.bf16.mxu0 0
    %165 = vmatpush1.bf16.msra.mxu0 %v102
    %166 = vmatprep.subr.bf16.mxu0 0
    %167 = vmatpush1.bf16.msra.mxu0 %v103
    %168 = vmatprep.subr.bf16.mxu0 0
    %169 = vmatpush1.bf16.msra.mxu0 0
    %170 = vmatprep.subr.bf16.mxu0 0
    %171 = vmatpush1.bf16.msra.mxu0 0
    %172 = vmatprep.subr.bf16.mxu0 0
    %173 = vmatpush1.bf16.msra.mxu0 0
    %174 = vmatprep.subr.bf16.mxu0 0
    %175 = vmatpush1.bf16.msra.mxu0 0
    %176 = vmatprep.subr.bf16.mxu0 0
    %177 = vmatpush1.bf16.msra.mxu0 0
    %178 = vmatprep.subr.bf16.mxu0 0
    %179 = vmatpush1.bf16.msra.mxu0 0
    %180 = vmatprep.subr.bf16.mxu0 0
    %181 = vmatpush1.bf16.msra.mxu0 0
    %182 = vmatprep.subr.bf16.mxu0 0
    %183 = vmatpush1.bf16.msra.mxu0 0
    %184 = vmatprep.mubr.bf16.mxu0 0
    %185 = vmatmul.mubr.bf16.gmra.mrb[0].mxu0 %v60
    %v186 = vpop.f32.mrb[0].mxu0
    %v187 = vadd.f32 %v147, %v186
    %v188 = vpop.f32.mrb[0].mxu0
    %v189 = vpop.f32.mrb[0].mxu0
    %v190 = vpop.f32.mrb[0].mxu0
    %191 = vdwg.mxu0
    %v192 = vmul.f32 %v187, 0.03125
    %v193 = vrsqrt.pop %v192
    %v194 = vmul.f32 %v192, %v193
    %vm195 = vcmp.eq.f32.partialorder %v192, inf
    %v196 = vsel %vm195, %v192, %v194
    %vm197 = vcmp.eq.f32.partialorder %v192, 0.0
    %v198 = vand.u32 %v192, 2147483648
    %v199 = vsel %vm197, %v198, %v196
    %v200 = vadd.f32 %v199, 1e-08
    %v201 = vrcp.pop %v200
    %v202 = vmul.f32 %v42, %v201
    %v203 = vld [vmem:[%s1] sm:$0x1]
    %v205 = vlaneseq
    %v206 = vshrl.u32 %v205, 7
    %v207 = vsub.s32 0, %v206
    %v208 = vrot.slane %v203, %v207
    %v210 = vmul.f32 %v202, %v208
    %211 = vst [vmem:[#allocation7] sm:$0xff] %v210
    // Predicated region
    $region22: #{tpu_custom_call.1} parent=1 // pred_check
      _
    $region23: #{tpu_custom_call.1} parent=1 // pred_check_branch
      %213 = sbr.rel (0) target = $region25
    $region24: #{tpu_custom_call.1} parent=1 // pred_region
      %s215 = ssub.s32 128, 128
      %216 = vsyncadd [#allocation4], %s215
      %s218 = sshll.u32 [#allocation7], 4
      %s219 = int_to_ptr.vmem [resolvable:$true] %s218
      %221 = dma.vmem_to_hbm [thread:$0]  %s219, 128, %s3, [#allocation4]
    $region25: #{tpu_custom_call.1} parent=1 // pred_fallthru
      _
    // Predicated region
    $region26: #{tpu_custom_call.1} parent=1 // pred_check
      _
    $region27: #{tpu_custom_call.1} parent=1 // pred_check_branch
      %223 = sbr.rel (0) target = $region29
    $region28: #{tpu_custom_call.1} parent=1 // pred_region
      %224 = dma.done [#allocation4], 128
    $region29: #{tpu_custom_call.1} parent=1 // pred_fallthru
      _
    %225 = vsyncpa [#allocation3], 1
    %226 = vsyncpa [#allocation6], 1
    %227 = vsyncpa [#allocation4], 1

</llo_original>
